<compile_context>
chip_gen: v6e
topology: v6e:2x2x1
jax: 0.10.0
libtpu: 0.0.40
codegen_flags: <defaults>
</compile_context>

<pallas_src>
import jax
import jax.numpy as jnp
from jax.experimental import pallas as pl
from jax.experimental.pallas import tpu as pltpu


LANE = 128            # TPU lane width (last dim), same for f32 / bf16
SUBLANE_BF16 = 16     # bf16 packs 16 sublanes per vreg (f32 packs 8)
MAX_BATCH_TILE = 1024 # large mem-bound tiles hit ~85% of HBM roofline


def _round_up(n, m):
    return ((n + m - 1) // m) * m


def _make_fused_mlp_kernel(n_layers):
    """refs = (x, w0, b0, w1, b1, ..., out); one batch tile per grid step.

    x / weights are bf16 (MXU-native), accumulation is f32 via
    preferred_element_type, bias-add + ReLU stay in f32 (v5e VPU has no bf16).
    Intermediates never touch HBM.
    """

    def kernel(*refs):
        x_ref = refs[0]
        o_ref = refs[-1]
        h = x_ref[...]                                     # bf16 (bm, D0_pad)
        for i in range(n_layers):
            w_ref = refs[1 + 2 * i]                        # bf16 (Din_pad, Dout_pad)
            b_ref = refs[2 + 2 * i]                        # f32  (1, Dout_pad)
            acc = jnp.dot(h, w_ref[...],
                          preferred_element_type=jnp.float32)
            acc = jnp.maximum(acc + b_ref[...], 0.0)       # f32 epilogue (VPU)
            if i + 1 < n_layers:
                h = acc.astype(jnp.bfloat16)               # next MXU pass in bf16
            else:
                o_ref[...] = acc.astype(o_ref.dtype)

    return kernel


def init_mlp_params(key, dims):
    """Match the PyTorch module's parameter shapes.

    Per layer i: v (out_dim, in_dim), g scalar, b (out_dim,).
    weight_norm(dim=None): W = g * v / ||v||_F ; g is initialized to ||v||_F.
    """
    params = []
    for i in range(len(dims) - 1):
        in_dim, out_dim = dims[i], dims[i + 1]
        key, k_v, k_b = jax.random.split(key, 3)
        bound = 1.0 / jnp.sqrt(in_dim)
        v = jax.random.uniform(k_v, (out_dim, in_dim), jnp.float32, -bound, bound)
        b = jax.random.uniform(k_b, (out_dim,), jnp.float32, -bound, bound)
        g = jnp.linalg.norm(v)          # scalar, PyTorch weight_norm(dim=None) init
        params.append({"v": v, "g": g, "b": b})
    return params


def prepare_params(params):
    """One-time prep (outside the hot path): fold the weight-norm scalar,
    transpose to (in_dim, out_dim), zero-pad to lane-dense 128 multiples, and
    store weights in bf16 (biases stay f32 for the f32 epilogue)."""
    prepped = []
    for layer in params:
        v, g, b = layer["v"], layer["g"], layer["b"]
        out_dim, in_dim = v.shape
        w_eff = (g / jnp.linalg.norm(v)) * v                 # (out_dim, in_dim) f32
        wt = w_eff.T                                         # (in_dim, out_dim)
        in_pad = _round_up(in_dim, LANE)
        out_pad = _round_up(out_dim, LANE)
        w_pad = (jnp.zeros((in_pad, out_pad), jnp.float32)
                 .at[:in_dim, :out_dim].set(wt)).astype(jnp.bfloat16)
        b_pad = jnp.zeros((1, out_pad), jnp.float32).at[0, :out_dim].set(b)
        prepped.append((w_pad, b_pad))
    return jax.tree_util.tree_map(jax.device_put, prepped)


def make_mlp_forward(dims):
    """Build a jitted forward: single fused pallas_call for the whole MLP,
    gridded over batch tiles (parallel -> both TCs on v7x)."""
    d_in, d_out = dims[0], dims[-1]
    n_layers = len(dims) - 1
    dims_pad = [_round_up(d, LANE) for d in dims]

    @jax.jit
    def fwd(x, prepped):
        B = x.shape[0]
        in_pad = dims_pad[0]
        out_pad = dims_pad[-1]

        # bf16 activations pack 16 sublanes per vreg; tile batch with large
        # blocks (<=1024 rows) so per-grid-step overhead is amortized.
        bm = min(_round_up(max(B, 1), SUBLANE_BF16), MAX_BATCH_TILE)
        B_pad = _round_up(B, bm)
        n_bm = B_pad // bm

        # Zero-pad activations to a lane/sublane-aligned bf16 slab.
        # TODO(synk): at tiny sizes this pad + the final slice are separate XLA
        # HBM ops of the same order as the kernel; amortize by batching many
        # forwards per call rather than micro-optimizing the kernel body.
        x_pad = jnp.zeros((B_pad, in_pad), jnp.bfloat16).at[:B, :d_in].set(
            x.astype(jnp.bfloat16))

        flat_params = []
        param_specs = []
        weight_bytes = 0
        for w, b in prepped:
            flat_params.extend([w, b])
            # Constant index_map: DMA'd once, VMEM-resident across the grid.
            param_specs.append(pl.BlockSpec(w.shape, lambda i: (0, 0)))
            param_specs.append(pl.BlockSpec(b.shape, lambda i: (0, 0)))
            weight_bytes += w.size * 2 + b.size * 4

        x_spec = pl.BlockSpec((bm, in_pad), lambda i: (i, 0))
        o_spec = pl.BlockSpec((bm, out_pad), lambda i: (i, 0))

        # VMEM budget: double-buffered activation blocks + resident params,
        # sized explicitly so v6e-tuned dims don't silently OOM on v7x (64 MiB
        # physical, 32 MiB scoped default).
        x_block_bytes = bm * in_pad * 2
        o_block_bytes = bm * out_pad * 4
        vmem_limit = 2 * (x_block_bytes + o_block_bytes + weight_bytes) + (8 << 20)
        vmem_limit = max(16 << 20, min(vmem_limit, 64 << 20))

        flops = 2 * B_pad * sum(dims_pad[i] * dims_pad[i + 1]
                                for i in range(n_layers))
        bytes_accessed = (x_pad.size * 2 + B_pad * out_pad * 4 + weight_bytes)

        kernel = _make_fused_mlp_kernel(n_layers)
        y_pad = pl.pallas_call(
            kernel,
            out_shape=jax.ShapeDtypeStruct((B_pad, out_pad), jnp.float32),
            grid=(n_bm,),
            in_specs=[x_spec] + param_specs,
            out_specs=o_spec,
            compiler_params=pltpu.CompilerParams(
                dimension_semantics=("parallel",),      # both TCs on v7x
                vmem_limit_bytes=vmem_limit),
            cost_estimate=pl.CostEstimate(
                flops=flops, transcendentals=0, bytes_accessed=bytes_accessed),
        )(x_pad, *flat_params)

        # TODO(synk): on v6e/v7x with hidden dims >= a few hundred, pad/tile the
        # feature (N/K) dims to 256 instead of 128 to fill the 2x256^2 MXU.
        return y_pad[:B, :d_out]

    return fwd


def mlp_reference(x, params):
    out = x
    for layer in params:
        v, g, b = layer["v"], layer["g"], layer["b"]
        w_eff = (g / jnp.linalg.norm(v)) * v
        out = jnp.maximum(out @ w_eff.T + b, 0.0)
    return out


if __name__ == "__main__":
    key = jax.random.PRNGKey(0)
    dims = [32, 64, 16]          # MLP(dims=[32, 64, 16], use_weight_norm=True)
    batch = 8

    key, k_x, k_p = jax.random.split(key, 3)
    x = jax.random.normal(k_x, (batch, dims[0]), jnp.float32)
    params = init_mlp_params(k_p, dims)

    prepped = prepare_params(params)        # one-time: fold norm, transpose, pad, bf16
    mlp_forward = make_mlp_forward(dims)

    y = mlp_forward(x, prepped)
    y = jax.block_until_ready(y)

    y_ref = mlp_reference(x, params)
    assert y.shape == (batch, dims[-1])
    # bf16 inputs / f32 accumulation: loosened tolerance vs the f32 reference.
    assert jnp.allclose(y, y_ref, atol=2e-2, rtol=2e-2), "mismatch vs reference"

    print("KERNEL_OK")
</pallas_src>

<mosaic_0001>
module attributes {stable_mosaic.version = 11 : i64} {
  func.func @kernel(%arg0: i32, %arg1: memref<16x128xbf16, #tpu.memory_space<vmem>>, %arg2: memref<128x128xbf16, #tpu.memory_space<vmem>>, %arg3: memref<1x128xf32, #tpu.memory_space<vmem>>, %arg4: memref<128x128xbf16, #tpu.memory_space<vmem>>, %arg5: memref<1x128xf32, #tpu.memory_space<vmem>>, %arg6: memref<16x128xf32, #tpu.memory_space<vmem>>) attributes {dimension_semantics = [#tpu.dimension_semantics<parallel>], iteration_bounds = array<i64: 1>, scalar_prefetch = 0 : i64, scratch_operands = 0 : i64, tpu.core_type = #tpu.core_type<tc>, window_params = [{transform_indices = @transform_0, window_bounds = array<i64: 16, 128>}, {pipeline_mode = #tpu.pipeline_mode<synchronous>, transform_indices = @transform_1, window_bounds = array<i64: 128, 128>}, {pipeline_mode = #tpu.pipeline_mode<synchronous>, transform_indices = @transform_2, window_bounds = array<i64: 1, 128>}, {pipeline_mode = #tpu.pipeline_mode<synchronous>, transform_indices = @transform_3, window_bounds = array<i64: 128, 128>}, {pipeline_mode = #tpu.pipeline_mode<synchronous>, transform_indices = @transform_4, window_bounds = array<i64: 1, 128>}, {transform_indices = @transform_5, window_bounds = array<i64: 16, 128>}]} {
    %c0 = arith.constant 0 : index
    %c0_0 = arith.constant 0 : index
    %0 = vector.load %arg1[%c0, %c0_0] : memref<16x128xbf16, #tpu.memory_space<vmem>>, vector<16x128xbf16>
    %c0_1 = arith.constant 0 : index
    %c0_2 = arith.constant 0 : index
    %1 = vector.load %arg2[%c0_1, %c0_2] : memref<128x128xbf16, #tpu.memory_space<vmem>>, vector<128x128xbf16>
    %cst = arith.constant dense<0.000000e+00> : vector<16x128xf32>
    %2 = tpu.matmul %0, %1, %cst {dimension_numbers = #tpu.dot_dimension_numbers<[1], [0], [0], [1], [0, 0, 1, 1], [], []>} : vector<16x128xbf16>, vector<128x128xbf16>, vector<16x128xf32> -> vector<16x128xf32>
    %c0_3 = arith.constant 0 : index
    %c0_4 = arith.constant 0 : index
    %3 = vector.load %arg3[%c0_3, %c0_4] : memref<1x128xf32, #tpu.memory_space<vmem>>, vector<1x128xf32>
    %4 = vector.broadcast %3 : vector<1x128xf32> to vector<16x128xf32>
    %5 = arith.addf %2, %4 : vector<16x128xf32>
    %cst_5 = arith.constant 0.000000e+00 : f32
    %6 = vector.broadcast %cst_5 : f32 to vector<16x128xf32>
    %7 = arith.maximumf %5, %6 : vector<16x128xf32>
    %8 = arith.truncf %7 : vector<16x128xf32> to vector<16x128xbf16>
    %c0_6 = arith.constant 0 : index
    %c0_7 = arith.constant 0 : index
    %9 = vector.load %arg4[%c0_6, %c0_7] : memref<128x128xbf16, #tpu.memory_space<vmem>>, vector<128x128xbf16>
    %cst_8 = arith.constant dense<0.000000e+00> : vector<16x128xf32>
    %10 = tpu.matmul %8, %9, %cst_8 {dimension_numbers = #tpu.dot_dimension_numbers<[1], [0], [0], [1], [0, 0, 1, 1], [], []>} : vector<16x128xbf16>, vector<128x128xbf16>, vector<16x128xf32> -> vector<16x128xf32>
    %c0_9 = arith.constant 0 : index
    %c0_10 = arith.constant 0 : index
    %11 = vector.load %arg5[%c0_9, %c0_10] : memref<1x128xf32, #tpu.memory_space<vmem>>, vector<1x128xf32>
    %12 = vector.broadcast %11 : vector<1x128xf32> to vector<16x128xf32>
    %13 = arith.addf %10, %12 : vector<16x128xf32>
    %cst_11 = arith.constant 0.000000e+00 : f32
    %14 = vector.broadcast %cst_11 : f32 to vector<16x128xf32>
    %15 = arith.maximumf %13, %14 : vector<16x128xf32>
    %c0_12 = arith.constant 0 : index
    %c0_13 = arith.constant 0 : index
    %16 = vector.load %arg6[%c0_12, %c0_13] : memref<16x128xf32, #tpu.memory_space<vmem>>, vector<16x128xf32>
    tpu.vector_store %arg6[%c0_12, %c0_13], %15 {strides = array<i32>} : memref<16x128xf32, #tpu.memory_space<vmem>>, vector<16x128xf32>,
    return
  }
  func.func @transform_0(%arg0: i32) -> (i32, i32) {
    %c0_i32 = arith.constant 0 : i32
    %c0_i32_0 = arith.constant 0 : i32
    return %arg0, %c0_i32 : i32, i32
  }
  func.func @transform_1(%arg0: i32) -> (i32, i32) {
    %c0_i32 = arith.constant 0 : i32
    %c0_i32_0 = arith.constant 0 : i32
    %c0_i32_1 = arith.constant 0 : i32
    return %c0_i32, %c0_i32_0 : i32, i32
  }
  func.func @transform_2(%arg0: i32) -> (i32, i32) {
    %c0_i32 = arith.constant 0 : i32
    %c0_i32_0 = arith.constant 0 : i32
    %c0_i32_1 = arith.constant 0 : i32
    return %c0_i32, %c0_i32_0 : i32, i32
  }
  func.func @transform_3(%arg0: i32) -> (i32, i32) {
    %c0_i32 = arith.constant 0 : i32
    %c0_i32_0 = arith.constant 0 : i32
    %c0_i32_1 = arith.constant 0 : i32
    return %c0_i32, %c0_i32_0 : i32, i32
  }
  func.func @transform_4(%arg0: i32) -> (i32, i32) {
    %c0_i32 = arith.constant 0 : i32
    %c0_i32_0 = arith.constant 0 : i32
    %c0_i32_1 = arith.constant 0 : i32
    return %c0_i32, %c0_i32_0 : i32, i32
  }
  func.func @transform_5(%arg0: i32) -> (i32, i32) {
    %c0_i32 = arith.constant 0 : i32
    %c0_i32_0 = arith.constant 0 : i32
    return %arg0, %c0_i32 : i32, i32
  }
}

</mosaic_0001>

<llo_original>
// kernel: fwd.1
$region0: #{fwd.1}
  #allocation0 [shape = 'u32[]', space=smem, size = 0x4, offset = 0x4, fixed_abs, tag = 'smem constant byte address 0x4 - core index']
  #allocation1 [shape = 'u32[144,128]{1,0:T(1,128)}', space=vmem, size = 0x12000, scoped, tag = 'internal scratch']
  %s0 = inlined_call_operand.vmem [shape: bf16[16,128], index: 0, kind: input, shape index: {}]
  %s1 = inlined_call_operand.hbm [shape: bf16[128,128], index: 1, kind: input, shape index: {}]
  %s2 = inlined_call_operand.vmem [shape: f32[1,128], index: 2, kind: input, shape index: {}]
  %s3 = inlined_call_operand.hbm [shape: bf16[128,128], index: 3, kind: input, shape index: {}]
  %s4 = inlined_call_operand.vmem [shape: f32[1,128], index: 4, kind: input, shape index: {}]
  %s5 = inlined_call_operand.vmem [shape: f32[16,128], index: 5, kind: output, shape index: {}]
  %s6 = sld [smem:[#allocation0]]
  $region38: #{fwd.1} parent=0
    _
  %s8 = ssub.s32 1, %s6
  %s9 = scalar_select 0, %s8, %s6
  $region1: #{fwd.1} parent=0
    #allocation2 [shape = 'u8[32768]{0}', space=vmem, size = 0x8000, scoped, tag = 'input window, operand 1, single buffered']
    #allocation3 [shape = 's32[1]{0}', space=sflag, size = 0x4, scoped, tag = 'scoped memory for fwd.1']
    #allocation4 [shape = 'u8[32768]{0}', space=vmem, size = 0x8000, scoped, tag = 'input window, operand 3, single buffered']
    #allocation5 [shape = 's32[1]{0}', space=sflag, size = 0x4, scoped, tag = 'scoped memory for fwd.1']
    %10 = vsyncpa [#allocation3], 0
    %11 = vsyncpa [#allocation5], 0
    // Predicated region
    $region2: #{fwd.1} parent=1 // pred_check
      _
    $region3: #{fwd.1} parent=1 // pred_check_branch
      %13 = sbr.rel (0) target = $region5
    $region4: #{fwd.1} parent=1 // pred_region
      _
    $region5: #{fwd.1} parent=1 // pred_fallthru
      _
    // Predicated region
    $region6: #{fwd.1} parent=1 // pred_check
      _
    $region7: #{fwd.1} parent=1 // pred_check_branch
      %15 = sbr.rel (0) target = $region9
    $region8: #{fwd.1} parent=1 // pred_region
      %s17 = ssub.s32 1024, 1024
      %18 = vsyncadd [#allocation3], %s17
      %s19 = sshll.u32 [#allocation2], 4
      %s20 = int_to_ptr.vmem [resolvable:$true] %s19
      %25 = dma.hbm_to_vmem [thread:$0]  %s1, 1024, %s20, [#allocation3], 64, 64, 4
    $region9: #{fwd.1} parent=1 // pred_fallthru
      _
    // Predicated region
    $region10: #{fwd.1} parent=1 // pred_check
      _
    $region11: #{fwd.1} parent=1 // pred_check_branch
      %27 = sbr.rel (0) target = $region13
    $region12: #{fwd.1} parent=1 // pred_region
      _
    $region13: #{fwd.1} parent=1 // pred_fallthru
      _
    // Predicated region
    $region14: #{fwd.1} parent=1 // pred_check
      _
    $region15: #{fwd.1} parent=1 // pred_check_branch
      %29 = sbr.rel (0) target = $region17
    $region16: #{fwd.1} parent=1 // pred_region
      %s31 = ssub.s32 1024, 1024
      %32 = vsyncadd [#allocation5], %s31
      %s33 = sshll.u32 [#allocation4], 4
      %s34 = int_to_ptr.vmem [resolvable:$true] %s33
      %39 = dma.hbm_to_vmem [thread:$0]  %s3, 1024, %s34, [#allocation5], 64, 64, 4
    $region17: #{fwd.1} parent=1 // pred_fallthru
      _
    // Predicated region
    $region18: #{fwd.1} parent=1 // pred_check
      _
    $region19: #{fwd.1} parent=1 // pred_check_branch
      %41 = sbr.rel (0) target = $region21
    $region20: #{fwd.1} parent=1 // pred_region
      _
    $region21: #{fwd.1} parent=1 // pred_fallthru
      _
    // Predicated region
    $region22: #{fwd.1} parent=1 // pred_check
      _
    $region23: #{fwd.1} parent=1 // pred_check_branch
      %43 = sbr.rel (0) target = $region25
    $region24: #{fwd.1} parent=1 // pred_region
      %44 = dma.done [#allocation3], 1024
    $region25: #{fwd.1} parent=1 // pred_fallthru
      _
    // Predicated region
    $region26: #{fwd.1} parent=1 // pred_check
      _
    $region27: #{fwd.1} parent=1 // pred_check_branch
      %46 = sbr.rel (0) target = $region29
    $region28: #{fwd.1} parent=1 // pred_region
      %47 = dma.done [#allocation5], 1024
    $region29: #{fwd.1} parent=1 // pred_fallthru
      _
    %v49 = vld [vmem:[%s0] sm:$0xf]
    %v50 = vld [vmem:[%s0 + $0x4] sm:$0xf]
    %v51 = vld [vmem:[#allocation2] sm:$0xf]
    %v52 = vld [vmem:[#allocation2 + $0x4] sm:$0xf]
    %v53 = vld [vmem:[#allocation2 + $0x8] sm:$0xf]
    %v54 = vld [vmem:[#allocation2 + $0xc] sm:$0xf]
    %v55 = vld [vmem:[#allocation2 + $0x10] sm:$0xf]
    %v56 = vld [vmem:[#allocation2 + $0x14] sm:$0xf]
    %v57 = vld [vmem:[#allocation2 + $0x18] sm:$0xf]
    %v58 = vld [vmem:[#allocation2 + $0x1c] sm:$0xf]
    %v59 = vld [vmem:[#allocation2 + $0x20] sm:$0xf]
    %v60 = vld [vmem:[#allocation2 + $0x24] sm:$0xf]
    %v61 = vld [vmem:[#allocation2 + $0x28] sm:$0xf]
    %v62 = vld [vmem:[#allocation2 + $0x2c] sm:$0xf]
    %v63 = vld [vmem:[#allocation2 + $0x30] sm:$0xf]
    %v64 = vld [vmem:[#allocation2 + $0x34] sm:$0xf]
    %v65 = vld [vmem:[#allocation2 + $0x38] sm:$0xf]
    %v66 = vld [vmem:[#allocation2 + $0x3c] sm:$0xf]
    %v67 = vld [vmem:[%s2] sm:$0x1]
    %v69 = vlaneseq
    %v70 = vshrl.u32 %v69, 7
    %v71 = vsub.s32 0, %v70
    %v72 = vrot.slane %v67, %v71
    %v76 = vunpack.c.l.b16 %v49
    %v77 = vunpack.c.l.b16 %v50
    %v78 = vpack.c.b16 %v77, %v76
    %v96 = vunpack.c.l.b16 %v51
    %v97 = vunpack.c.l.b16 %v52
    %v98 = vunpack.c.l.b16 %v53
    %v99 = vunpack.c.l.b16 %v54
    %v100 = vunpack.c.l.b16 %v55
    %v101 = vunpack.c.l.b16 %v56
    %v102 = vunpack.c.l.b16 %v57
    %v103 = vunpack.c.l.b16 %v58
    %v104 = vunpack.c.l.b16 %v59
    %v105 = vunpack.c.l.b16 %v60
    %v106 = vunpack.c.l.b16 %v61
    %v107 = vunpack.c.l.b16 %v62
    %v108 = vunpack.c.l.b16 %v63
    %v109 = vunpack.c.l.b16 %v64
    %v110 = vunpack.c.l.b16 %v65
    %v111 = vunpack.c.l.b16 %v66
    %v112 = vpack.c.b16 %v97, %v96
    %v113 = vpack.c.b16 %v99, %v98
    %v114 = vpack.c.b16 %v101, %v100
    %v115 = vpack.c.b16 %v103, %v102
    %v116 = vpack.c.b16 %v105, %v104
    %v117 = vpack.c.b16 %v107, %v106
    %v118 = vpack.c.b16 %v109, %v108
    %v119 = vpack.c.b16 %v111, %v110
    %128 = vmatprep.subr.bf16.mxu0 0
    %129 = vmatpush1.bf16.msra.mxu0 %v119
    %130 = vmatprep.subr.bf16.mxu0 0
    %131 = vmatpush1.bf16.msra.mxu0 %v118
    %132 = vmatprep.subr.bf16.mxu0 0
    %133 = vmatpush1.bf16.msra.mxu0 %v117
    %134 = vmatprep.subr.bf16.mxu0 0
    %135 = vmatpush1.bf16.msra.mxu0 %v116
    %136 = vmatprep.subr.bf16.mxu0 0
    %137 = vmatpush1.bf16.msra.mxu0 %v115
    %138 = vmatprep.subr.bf16.mxu0 0
    %139 = vmatpush1.bf16.msra.mxu0 %v114
    %140 = vmatprep.subr.bf16.mxu0 0
    %141 = vmatpush1.bf16.msra.mxu0 %v113
    %142 = vmatprep.subr.bf16.mxu0 0
    %143 = vmatpush1.bf16.msra.mxu0 %v112
    %144 = vmatprep.subr.bf16.mxu0 0
    %145 = vmatpush2.bf16.msra.mxu0 0
    %146 = vmatprep.subr.bf16.mxu0 0
    %147 = vmatpush2.bf16.msra.mxu0 0
    %148 = vmatprep.subr.bf16.mxu0 0
    %149 = vmatpush2.bf16.msra.mxu0 0
    %150 = vmatprep.subr.bf16.mxu0 0
    %151 = vmatpush2.bf16.msra.mxu0 0
    %152 = vmatprep.subr.bf16.mxu0 0
    %153 = vmatpush2.bf16.msra.mxu0 0
    %154 = vmatprep.subr.bf16.mxu0 0
    %155 = vmatpush2.bf16.msra.mxu0 0
    %156 = vmatprep.subr.bf16.mxu0 0
    %157 = vmatpush2.bf16.msra.mxu0 0
    %158 = vmatprep.subr.bf16.mxu0 0
    %159 = vmatpush2.bf16.msra.mxu0 0
    %160 = vmatprep.mubr.bf16.mxu0 0
    %161 = vmatmul.mubr.bf16.gmra.mxu0 %v78
    %v162 = vpop.f32.mrf.mxu0
    %v163 = vadd.f32 %v72, %v162
    %v164 = vpop.f32.mrf.mxu0
    %v165 = vpop.f32.mrf.mxu0
    %v166 = vadd.f32 %v72, %v165
    %v167 = vpop.f32.mrf.mxu0
    %168 = vdwg.mxu0
    %v169 = vmax.f32 %v163, 0.0
    %v170 = vmax.f32 %v166, 0.0
    %v171 = vpack.c.bf16 %v170, %v169
    %v172 = vld [vmem:[#allocation4] sm:$0xf]
    %v173 = vld [vmem:[#allocation4 + $0x4] sm:$0xf]
    %v174 = vld [vmem:[#allocation4 + $0x8] sm:$0xf]
    %v175 = vld [vmem:[#allocation4 + $0xc] sm:$0xf]
    %v176 = vld [vmem:[#allocation4 + $0x10] sm:$0xf]
    %v177 = vld [vmem:[#allocation4 + $0x14] sm:$0xf]
    %v178 = vld [vmem:[#allocation4 + $0x18] sm:$0xf]
    %v179 = vld [vmem:[#allocation4 + $0x1c] sm:$0xf]
    %v180 = vld [vmem:[#allocation4 + $0x20] sm:$0xf]
    %v181 = vld [vmem:[#allocation4 + $0x24] sm:$0xf]
    %v182 = vld [vmem:[#allocation4 + $0x28] sm:$0xf]
    %v183 = vld [vmem:[#allocation4 + $0x2c] sm:$0xf]
    %v184 = vld [vmem:[#allocation4 + $0x30] sm:$0xf]
    %v185 = vld [vmem:[#allocation4 + $0x34] sm:$0xf]
    %v186 = vld [vmem:[#allocation4 + $0x38] sm:$0xf]
    %v187 = vld [vmem:[#allocation4 + $0x3c] sm:$0xf]
    %v188 = vld [vmem:[%s4] sm:$0x1]
    %v190 = vlaneseq
    %v191 = vshrl.u32 %v190, 7
    %v192 = vsub.s32 0, %v191
    %v193 = vrot.slane %v188, %v192
    %v211 = vunpack.c.l.b16 %v172
    %v212 = vunpack.c.l.b16 %v173
    %v213 = vunpack.c.l.b16 %v174
    %v214 = vunpack.c.l.b16 %v175
    %v215 = vunpack.c.l.b16 %v176
    %v216 = vunpack.c.l.b16 %v177
    %v217 = vunpack.c.l.b16 %v178
    %v218 = vunpack.c.l.b16 %v179
    %v219 = vunpack.c.l.b16 %v180
    %v220 = vunpack.c.l.b16 %v181
    %v221 = vunpack.c.l.b16 %v182
    %v222 = vunpack.c.l.b16 %v183
    %v223 = vunpack.c.l.b16 %v184
    %v224 = vunpack.c.l.b16 %v185
    %v225 = vunpack.c.l.b16 %v186
    %v226 = vunpack.c.l.b16 %v187
    %v227 = vpack.c.b16 %v212, %v211
    %v228 = vpack.c.b16 %v214, %v213
    %v229 = vpack.c.b16 %v216, %v215
    %v230 = vpack.c.b16 %v218, %v217
    %v231 = vpack.c.b16 %v220, %v219
    %v232 = vpack.c.b16 %v222, %v221
    %v233 = vpack.c.b16 %v224, %v223
    %v234 = vpack.c.b16 %v226, %v225
    %243 = vmatprep.subr.bf16.mxu0 0
    %244 = vmatpush1.bf16.msra.mxu0 %v234
    %245 = vmatprep.subr.bf16.mxu0 0
    %246 = vmatpush1.bf16.msra.mxu0 %v233
    %247 = vmatprep.subr.bf16.mxu0 0
    %248 = vmatpush1.bf16.msra.mxu0 %v232
    %249 = vmatprep.subr.bf16.mxu0 0
    %250 = vmatpush1.bf16.msra.mxu0 %v231
    %251 = vmatprep.subr.bf16.mxu0 0
    %252 = vmatpush1.bf16.msra.mxu0 %v230
    %253 = vmatprep.subr.bf16.mxu0 0
    %254 = vmatpush1.bf16.msra.mxu0 %v229
    %255 = vmatprep.subr.bf16.mxu0 0
    %256 = vmatpush1.bf16.msra.mxu0 %v228
    %257 = vmatprep.subr.bf16.mxu0 0
    %258 = vmatpush1.bf16.msra.mxu0 %v227
    %259 = vmatprep.subr.bf16.mxu0 0
    %260 = vmatpush2.bf16.msra.mxu0 0
    %261 = vmatprep.subr.bf16.mxu0 0
    %262 = vmatpush2.bf16.msra.mxu0 0
    %263 = vmatprep.subr.bf16.mxu0 0
    %264 = vmatpush2.bf16.msra.mxu0 0
    %265 = vmatprep.subr.bf16.mxu0 0
    %266 = vmatpush2.bf16.msra.mxu0 0
    %267 = vmatprep.subr.bf16.mxu0 0
    %268 = vmatpush2.bf16.msra.mxu0 0
    %269 = vmatprep.subr.bf16.mxu0 0
    %270 = vmatpush2.bf16.msra.mxu0 0
    %271 = vmatprep.subr.bf16.mxu0 0
    %272 = vmatpush2.bf16.msra.mxu0 0
    %273 = vmatprep.subr.bf16.mxu0 0
    %274 = vmatpush2.bf16.msra.mxu0 0
    %275 = vmatprep.mubr.bf16.mxu0 0
    %276 = vmatmul.mubr.bf16.gmra.mxu0 %v171
    %v277 = vpop.f32.mrf.mxu0
    %v278 = vadd.f32 %v193, %v277
    %v279 = vpop.f32.mrf.mxu0
    %v280 = vpop.f32.mrf.mxu0
    %v281 = vadd.f32 %v193, %v280
    %v282 = vpop.f32.mrf.mxu0
    %283 = vdwg.mxu0
    %v284 = vmax.f32 %v278, 0.0
    %v285 = vmax.f32 %v281, 0.0
    %286 = vst [vmem:[%s5] sm:$0xff] %v284
    %287 = vst [vmem:[%s5 + $0x8] sm:$0xff] %v285
    // Predicated region
    $region30: #{fwd.1} parent=1 // pred_check
      _
    $region31: #{fwd.1} parent=1 // pred_check_branch
      %289 = sbr.rel (0) target = $region33
    $region32: #{fwd.1} parent=1 // pred_region
      _
    $region33: #{fwd.1} parent=1 // pred_fallthru
      _
    // Predicated region
    $region34: #{fwd.1} parent=1 // pred_check
      _
    $region35: #{fwd.1} parent=1 // pred_check_branch
      %291 = sbr.rel (0) target = $region37
    $region36: #{fwd.1} parent=1 // pred_region
      _
    $region37: #{fwd.1} parent=1 // pred_fallthru
      _
    %292 = vsyncpa [#allocation3], 1
    %293 = vsyncpa [#allocation5], 1

</llo_original>
